<compile_context>
chip_gen: v5e
topology: v5e:2x2
jax: 0.10.0
libtpu: 0.0.40
codegen_flags: <defaults>
</compile_context>

<pallas_src>
import jax
import jax.numpy as jnp
from jax.experimental import pallas as pl
from jax.experimental.pallas import tpu as pltpu


def _latent_embedding_kernel(z_ref, mask_ref, out_ref):
    # z_ref:    (TB, TC) block in VMEM
    # mask_ref: (TB, 1)  block in VMEM (drop_mask as a column, z dtype)
    # out_ref:  (TB, TC)
    keep = 1.0 - mask_ref[...]          # (TB, 1); cheap VPU work, hidden under DMA
    out_ref[...] = z_ref[...] * keep    # broadcast over the lane (channel) axis


def _round_up(x, m):
    return ((x + m - 1) // m) * m


def _sublane_multiple(dtype):
    # Minimum sublane tile by dtype packing: f32 -> 8, bf16/f16 -> 16, int8/fp8 -> 32.
    return {4: 8, 2: 16, 1: 32}.get(jnp.dtype(dtype).itemsize, 8)


def _latent_embedding_pallas(z, drop_mask, *, target_tile_bytes=2 * 1024 * 1024):
    assert jnp.issubdtype(z.dtype, jnp.floating), "z must be a floating dtype"
    B, C = z.shape
    itemsize = jnp.dtype(z.dtype).itemsize
    sublane = _sublane_multiple(z.dtype)

    # Cap tile so the double-buffered working set (2 z bufs + 2 out bufs ~= 4x tile)
    # stays <= ~48 MiB (v7x has only 64 MiB physical VMEM).
    tile_budget = min(int(target_tile_bytes), 12 * 1024 * 1024)
    tile_budget = max(tile_budget, sublane * 128 * itemsize)

    # Channel tile: use the FULL channel dim when it fits (no pad, no partial lane
    # stores beyond the single ragged edge); otherwise a multiple of 128 lanes.
    if C * itemsize * sublane <= tile_budget:
        tc = C
    else:
        tc = max(128, (tile_budget // (itemsize * sublane)) // 128 * 128)

    # Batch tile: fill the tile budget, rounded to the sublane packing, and never
    # larger than the (sublane-rounded) batch itself.
    tb = tile_budget // (tc * itemsize)
    tb = max(sublane, (tb // sublane) * sublane)
    tb = min(tb, _round_up(B, sublane))

    # v7x: make sure the parallel batch axis has >= 2 steps when B allows it,
    # so both TensorCores issue DMAs concurrently.
    if pl.cdiv(B, tb) < 2 and B > sublane:
        tb = max(sublane, _round_up((B + 1) // 2, sublane))

    grid = (pl.cdiv(B, tb), pl.cdiv(C, tc))

    # drop_mask as a (B, 1) column in z's dtype (0/1 are exact in bf16/f16).
    mask_col = drop_mask.reshape(B, 1).astype(z.dtype)

    compiler_kwargs = dict(dimension_semantics=("parallel", "parallel"))
    tile_bytes = tb * tc * itemsize
    working_set = 4 * tile_bytes + 4 * tb * itemsize + (1 << 20)
    if working_set > 12 * 1024 * 1024:
        # Only needed when a caller raises target_tile_bytes above the defaults
        # (v5e scoped default is 16 MiB); keep headroom under physical VMEM.
        compiler_kwargs["vmem_limit_bytes"] = min(working_set + (8 << 20), 96 << 20)

    return pl.pallas_call(
        _latent_embedding_kernel,
        out_shape=jax.ShapeDtypeStruct((B, C), z.dtype),
        grid=grid,
        in_specs=[
            pl.BlockSpec((tb, tc), lambda i, j: (i, j)),
            pl.BlockSpec((tb, 1), lambda i, j: (i, 0)),
        ],
        out_specs=pl.BlockSpec((tb, tc), lambda i, j: (i, j)),
        compiler_params=pltpu.CompilerParams(**compiler_kwargs),
    )(z, mask_col)


def latent_embedding(z, drop_mask, *, target_tile_bytes=2 * 1024 * 1024,
                     min_pallas_elements=1 << 15):
    """
    z:         (B, C) floating array (the latent code)
    drop_mask: (B,)   array; condition is zeroed where drop_mask == 1
    returns    (B, C) array, same dtype as z
    """
    B, C = z.shape
    if B * C < min_pallas_elements:
        # Launch overhead dominates for tiny inputs; let XLA fuse the multiply
        # into the producer/consumer instead of a standalone pallas_call.
        return z * (1 - drop_mask.reshape(B, 1).astype(z.dtype))
    return _latent_embedding_pallas(z, drop_mask, target_tile_bytes=target_tile_bytes)


if __name__ == "__main__":
    key = jax.random.PRNGKey(0)
    k_z, k_m, k_z2, k_m2 = jax.random.split(key, 4)

    # Shapes implied by the module: z is (batch, n_channels).
    B, n_channels = 2, 32
    z = jax.random.normal(k_z, (B, n_channels), dtype=jnp.float32)
    drop_mask = jax.random.bernoulli(k_m, p=0.5, shape=(B,)).astype(jnp.float32)

    # Force the Pallas path (min_pallas_elements=0) so the kernel is exercised.
    out = latent_embedding(z, drop_mask, min_pallas_elements=0)
    out = jax.block_until_ready(out)
    ref = z * (1.0 - drop_mask[:, None])
    assert out.shape == (B, n_channels)
    assert out.dtype == z.dtype
    assert jnp.allclose(out, ref, atol=1e-6), "mismatch vs reference"

    # Ragged case: B and C not multiples of (8, 128) exercises partial blocks
    # on both grid axes (no host-side padding anywhere).
    B2, C2 = 13, 96
    z2 = jax.random.normal(k_z2, (B2, C2), dtype=jnp.float32)
    m2 = jax.random.bernoulli(k_m2, p=0.5, shape=(B2,)).astype(jnp.float32)
    out2 = jax.block_until_ready(latent_embedding(z2, m2, min_pallas_elements=0))
    ref2 = z2 * (1.0 - m2[:, None])
    assert out2.shape == (B2, C2)
    assert jnp.allclose(out2, ref2, atol=1e-6), "mismatch vs reference (ragged)"

    print("KERNEL_OK")
</pallas_src>

<mosaic_0001>
module attributes {stable_mosaic.version = 11 : i64} {
  func.func @_latent_embedding_kernel(%arg0: i32, %arg1: i32, %arg2: memref<8x32xf32, #tpu.memory_space<vmem>>, %arg3: memref<8x1xf32, #tpu.memory_space<vmem>>, %arg4: memref<8x32xf32, #tpu.memory_space<vmem>>) attributes {dimension_semantics = [#tpu.dimension_semantics<parallel>, #tpu.dimension_semantics<parallel>], iteration_bounds = array<i64: 1, 1>, scalar_prefetch = 0 : i64, scratch_operands = 0 : i64, tpu.core_type = #tpu.core_type<tc>, window_params = [{transform_indices = @transform_0, window_bounds = array<i64: 8, 32>}, {transform_indices = @transform_1, window_bounds = array<i64: 8, 1>}, {transform_indices = @transform_2, window_bounds = array<i64: 8, 32>}]} {
    %c0 = arith.constant 0 : index
    %c0_0 = arith.constant 0 : index
    %0 = vector.load %arg3[%c0, %c0_0] : memref<8x1xf32, #tpu.memory_space<vmem>>, vector<8x1xf32>
    %cst = arith.constant 1.000000e+00 : f32
    %1 = vector.broadcast %cst : f32 to vector<8x1xf32>
    %2 = arith.subf %1, %0 : vector<8x1xf32>
    %c0_1 = arith.constant 0 : index
    %c0_2 = arith.constant 0 : index
    %3 = vector.load %arg2[%c0_1, %c0_2] : memref<8x32xf32, #tpu.memory_space<vmem>>, vector<8x32xf32>
    %4 = vector.broadcast %2 : vector<8x1xf32> to vector<8x32xf32>
    %5 = arith.mulf %3, %4 : vector<8x32xf32>
    %c0_3 = arith.constant 0 : index
    %c0_4 = arith.constant 0 : index
    %6 = vector.load %arg4[%c0_3, %c0_4] : memref<8x32xf32, #tpu.memory_space<vmem>>, vector<8x32xf32>
    tpu.vector_store %arg4[%c0_3, %c0_4], %5 {strides = array<i32>} : memref<8x32xf32, #tpu.memory_space<vmem>>, vector<8x32xf32>,
    return
  }
  func.func @transform_0(%arg0: i32, %arg1: i32) -> (i32, i32) {
    %c0_i32 = arith.constant 0 : i32
    return %arg0, %arg1 : i32, i32
  }
  func.func @transform_1(%arg0: i32, %arg1: i32) -> (i32, i32) {
    %c0_i32 = arith.constant 0 : i32
    %c0_i32_0 = arith.constant 0 : i32
    return %arg0, %c0_i32 : i32, i32
  }
  func.func @transform_2(%arg0: i32, %arg1: i32) -> (i32, i32) {
    %c0_i32 = arith.constant 0 : i32
    return %arg0, %arg1 : i32, i32
  }
}

</mosaic_0001>

<llo_original>
// kernel: tpu_custom_call.1
$region0: #{tpu_custom_call.1}
  #allocation0 [shape = 'u32[]', space=smem, size = 0x4, offset = 0x4, fixed_abs, tag = 'smem constant byte address 0x4 - core index']
  #allocation1 [shape = 'u32[72,128]{1,0:T(1,128)}', space=vmem, size = 0x9000, scoped, tag = 'internal scratch']
  %s0 = inlined_call_operand.vmem [shape: f32[2,32], index: 0, kind: input, shape index: {}]
  %s1 = inlined_call_operand.vmem [shape: f32[2,1], index: 1, kind: input, shape index: {}]
  %s2 = inlined_call_operand.hbm [shape: f32[2,32], index: 2, kind: output, shape index: {}]
  %s3 = sld [smem:[#allocation0]]
  $region18: #{tpu_custom_call.1} parent=0
    _
  %s5 = ssub.s32 1, %s3
  %s6 = scalar_select 0, %s5, %s3
  $region1: #{tpu_custom_call.1} parent=0
    #allocation2 [shape = 'u8[4096]{0}', space=vmem, size = 0x1000, scoped, tag = 'output window, operand 0, single buffered']
    #allocation3 [shape = 's32[1]{0}', space=sflag, size = 0x4, scoped, tag = 'scoped memory for tpu_custom_call.1']
    %7 = vsyncpa [#allocation3], 0
    // Predicated region
    $region2: #{tpu_custom_call.1} parent=1 // pred_check
      _
    $region3: #{tpu_custom_call.1} parent=1 // pred_check_branch
      %9 = sbr.rel (0) target = $region5
    $region4: #{tpu_custom_call.1} parent=1 // pred_region
      _
    $region5: #{tpu_custom_call.1} parent=1 // pred_fallthru
      _
    // Predicated region
    $region6: #{tpu_custom_call.1} parent=1 // pred_check
      _
    $region7: #{tpu_custom_call.1} parent=1 // pred_check_branch
      %11 = sbr.rel (0) target = $region9
    $region8: #{tpu_custom_call.1} parent=1 // pred_region
      _
    $region9: #{tpu_custom_call.1} parent=1 // pred_fallthru
      _
    %v12 = vld [vmem:[%s1] sm:$0xff]
    %v13 = vsub.f32 1.0, %v12
    %v14 = vld [vmem:[%s0] sm:$0xff]
    %16 = vset.pattern.permute.xlu0 0
    %17 = vperm.xlu0 %16, %v13
    %v18 = vpop.permute.xlu0 %17
    %v20 = vmul.f32 %v14, %v18
    %vm21 = vcmask 261120
    %22 = vst.msk [vmem:[#allocation2] sm:$0xff] %vm21, %v20
    // Predicated region
    $region10: #{tpu_custom_call.1} parent=1 // pred_check
      _
    $region11: #{tpu_custom_call.1} parent=1 // pred_check_branch
      %24 = sbr.rel (0) target = $region13
    $region12: #{tpu_custom_call.1} parent=1 // pred_region
      %26 = vsyncadd [#allocation3], 96
      %s27 = sshll.u32 [#allocation2], 4
      %s28 = int_to_ptr.vmem [resolvable:$true] %s27
      %s29 = sshll.u32 %s2, 4
      %s30 = int_to_ptr.hbm [resolvable:$true] %s29
      %35 = dma.vmem_to_hbm [thread:$0]  %s28, 32, %s30, [#allocation3], 32, 32, 2
    $region13: #{tpu_custom_call.1} parent=1 // pred_fallthru
      _
    // Predicated region
    $region14: #{tpu_custom_call.1} parent=1 // pred_check
      _
    $region15: #{tpu_custom_call.1} parent=1 // pred_check_branch
      %37 = sbr.rel (0) target = $region17
    $region16: #{tpu_custom_call.1} parent=1 // pred_region
      %39 = dma.done [#allocation3], 128
    $region17: #{tpu_custom_call.1} parent=1 // pred_fallthru
      _
    %40 = vsyncpa [#allocation3], 1

</llo_original>
